<compile_context>
chip_gen: v6e
topology: v6e:2x2x1
jax: 0.10.0
libtpu: 0.0.40
codegen_flags: <defaults>
</compile_context>

<pallas_src>
import jax
import jax.numpy as jnp
from jax.experimental import pallas as pl
from jax.experimental.pallas import tpu as pltpu


def _round_up(v, m):
    return (v + m - 1) // m * m


def _vmem_budget_bytes():
    """(tile budget, vmem_limit) from physical VMEM; conservative fallback."""
    cap = 64 * 1024 * 1024
    try:
        info = pltpu.get_tpu_info()
        cap = int(getattr(info, "vmem_capacity_bytes", cap)) or cap
    except Exception:
        pass
    return int(cap * 0.70), int(cap * 0.85)


def _pick_tiles(m_hint, d_pad, f_hint, in_itemsize, out_itemsize, use_scratch,
                budget):
    """Pick (tile_m, tile_f) under the VMEM budget.

    Preference order:
      1) tile_f == f_hint (single d_ff chunk -> weights stream from HBM once),
         with the largest tile_m that fits.
      2) Otherwise chunk d_ff: keep tile_m as large as possible (arithmetic
         intensity scales with tile_m), shrink tile_f, floored at 256.
    """

    def footprint(tm, tf):
        x_t = 2 * tm * d_pad * in_itemsize                    # x tile, dbl-buffered
        w_t = 2 * (d_pad * tf + tf * d_pad) * in_itemsize      # W1/W2 chunks, dbl-buffered
        b_t = 2 * (tf + d_pad) * 4                             # bias chunks
        o_t = 2 * tm * d_pad * out_itemsize                    # output tile, dbl-buffered
        acc_t = tm * d_pad * 4 if use_scratch else 0           # f32 accumulator scratch
        h_t = tm * tf * (4 + in_itemsize)                      # matmul1 result + cast copy
        return x_t + w_t + b_t + o_t + acc_t + h_t

    tm_cands = sorted({min(m_hint, c) for c in (1024, 512, 384, 256, 128)},
                      reverse=True)

    # 1) Single d_ff chunk: W1/W2 DMA'd exactly once over the whole grid.
    for tm in tm_cands:
        if footprint(tm, f_hint) <= budget:
            return tm, f_hint

    # 2) Chunked d_ff: big tile_m first, tile_f floored at 256 (256-wide MXUs).
    tf_cands = sorted({min(f_hint, c) for c in (2048, 1024, 512, 256)},
                      reverse=True)
    for tm in tm_cands:
        for tf in tf_cands:
            if footprint(tm, tf) <= budget:
                return tm, tf
    return 128, 256


def _ffn_kernel(x_ref, w1_ref, b1_ref, w2_ref, b2_ref, o_ref, *scratch):
    # Grid: (token tiles [parallel], d_ff chunks [arbitrary, reduction]).
    # If no scratch is passed, the f32 output tile itself is the accumulator.
    acc_ref = scratch[0] if scratch else o_ref
    j = pl.program_id(1)

    # linear1 chunk + bias + ReLU:  (tile_m, D) @ (D, tile_f) -> f32
    h = jnp.dot(x_ref[...], w1_ref[...], preferred_element_type=jnp.float32)
    h = jnp.maximum(h + b1_ref[...], 0.0)

    # linear2 chunk contribution: (tile_m, tile_f) @ (tile_f, D) -> f32
    contrib = jnp.dot(h.astype(w2_ref.dtype), w2_ref[...],
                      preferred_element_type=jnp.float32)

    @pl.when(j == 0)
    def _():
        # Fold b2 into the first chunk: no separate zero-fill or bias pass.
        acc_ref[...] = (contrib + b2_ref[...]).astype(acc_ref.dtype)

    @pl.when(j > 0)
    def _():
        acc_ref[...] = acc_ref[...] + contrib

    if scratch:
        @pl.when(j == pl.num_programs(1) - 1)
        def _():
            o_ref[...] = acc_ref[...].astype(o_ref.dtype)


def _prep(a, target_shape, dtype):
    """Cast / zero-pad only when actually needed (skip per-call weight rewrite)."""
    if a.dtype != dtype:
        a = a.astype(dtype)
    pads = tuple((0, t - s) for s, t in zip(a.shape, target_shape))
    if any(p[1] for p in pads):
        a = jnp.pad(a, pads)
    return a


def feed_forward(x, w1, b1, w2, b2, *, tile_m=None, tile_f=None,
                 compute_dtype=None):
    """y = relu(x @ w1 + b1) @ w2 + b2.

    x:  (..., modal_dim)
    w1: (modal_dim, d_ff)   b1: (d_ff,)
    w2: (d_ff, modal_dim)   b2: (modal_dim,)
    compute_dtype: dtype fed to the MXU (bf16 is fine on v5e/v6e/v7x);
                   accumulation is always f32. Defaults to x.dtype.
    """
    orig_shape = x.shape
    modal_dim = orig_shape[-1]
    d_ff = w1.shape[1]
    out_dtype = x.dtype
    if compute_dtype is None:
        compute_dtype = x.dtype
    in_itemsize = jnp.dtype(compute_dtype).itemsize
    out_itemsize = jnp.dtype(out_dtype).itemsize
    use_scratch = jnp.dtype(out_dtype) != jnp.dtype(jnp.float32)

    x2d = x.reshape(-1, modal_dim)
    m = x2d.shape[0]

    # Lane-dense feature dims (multiples of 128) -> unmasked vector stores.
    d_pad = _round_up(modal_dim, 128)
    m_hint = _round_up(m, 128)
    f_hint = _round_up(d_ff, 128)

    budget, vmem_limit = _vmem_budget_bytes()
    auto_tm, auto_tf = _pick_tiles(m_hint, d_pad, f_hint, in_itemsize,
                                   out_itemsize, use_scratch, budget)
    if tile_m is None:
        tile_m = auto_tm
    if tile_f is None:
        tile_f = auto_tf

    m_pad = _round_up(m, tile_m)
    f_pad = _round_up(d_ff, tile_f)

    # v7x megacore: when weights are streamed only once anyway (single d_ff
    # chunk), split the token axis so grid[0] >= 2 and both TensorCores work.
    if tile_f == f_pad and m_pad == tile_m and tile_m >= 256 and tile_m % 256 == 0:
        tile_m //= 2
        m_pad = _round_up(m, tile_m)

    # Zero-pad (only when needed). Padded rows/cols contribute nothing to the
    # un-padded output region, which we slice out at the end.
    x_p = _prep(x2d, (m_pad, d_pad), compute_dtype)
    w1_p = _prep(w1, (d_pad, f_pad), compute_dtype)
    b1_p = _prep(b1.reshape(1, -1), (1, f_pad), jnp.float32)
    w2_p = _prep(w2, (f_pad, d_pad), compute_dtype)
    b2_p = _prep(b2.reshape(1, -1), (1, d_pad), jnp.float32)

    grid = (m_pad // tile_m, f_pad // tile_f)

    flops = 4 * m_pad * d_pad * f_pad  # two matmuls, 2*M*K*N each
    weight_reads = 1 if f_pad == tile_f else grid[0]
    bytes_accessed = (
        x_p.size * in_itemsize
        + weight_reads * (w1_p.size + w2_p.size) * in_itemsize
        + weight_reads * b1_p.size * 4 + b2_p.size * 4
        + m_pad * d_pad * out_itemsize
    )

    scratch_shapes = ([pltpu.VMEM((tile_m, d_pad), jnp.float32)]
                      if use_scratch else [])

    out_p = pl.pallas_call(
        _ffn_kernel,
        out_shape=jax.ShapeDtypeStruct((m_pad, d_pad), out_dtype),
        grid_spec=pltpu.PrefetchScalarGridSpec(
            num_scalar_prefetch=0,
            grid=grid,
            in_specs=[
                pl.BlockSpec((tile_m, d_pad), lambda i, j: (i, 0)),   # x tile
                pl.BlockSpec((d_pad, tile_f), lambda i, j: (0, j)),   # W1 chunk
                pl.BlockSpec((1, tile_f), lambda i, j: (0, j)),       # b1 chunk
                pl.BlockSpec((tile_f, d_pad), lambda i, j: (j, 0)),   # W2 chunk
                pl.BlockSpec((1, d_pad), lambda i, j: (0, 0)),        # b2
            ],
            out_specs=pl.BlockSpec((tile_m, d_pad), lambda i, j: (i, 0)),
            scratch_shapes=scratch_shapes,
        ),
        compiler_params=pltpu.CompilerParams(
            dimension_semantics=("parallel", "arbitrary"),
            vmem_limit_bytes=vmem_limit,
        ),
        cost_estimate=pl.CostEstimate(
            flops=flops, transcendentals=0, bytes_accessed=bytes_accessed),
    )(x_p, w1_p, b1_p, w2_p, b2_p)

    out2d = out_p[:m, :modal_dim]
    return out2d.reshape(orig_shape)


def xavier_uniform(key, fan_in, fan_out, dtype=jnp.float32):
    limit = jnp.sqrt(6.0 / (fan_in + fan_out)).astype(dtype)
    return jax.random.uniform(key, (fan_in, fan_out), dtype,
                              minval=-limit, maxval=limit)


if __name__ == "__main__":
    # Small shapes consistent with the module: modal_dim=32, d_ff=64,
    # x of shape (batch=2, seq=8, modal_dim=32).
    modal_dim, d_ff = 32, 64
    batch, seq = 2, 8

    key = jax.random.PRNGKey(0)
    kx, kw1, kw2 = jax.random.split(key, 3)

    x = jax.random.normal(kx, (batch, seq, modal_dim), jnp.float32)
    # Xavier-uniform weights stored as (in_features, out_features), zero biases.
    w1 = xavier_uniform(kw1, modal_dim, d_ff)
    b1 = jnp.zeros((d_ff,), jnp.float32)
    w2 = xavier_uniform(kw2, d_ff, modal_dim)
    b2 = jnp.zeros((modal_dim,), jnp.float32)

    # f32 path (matches the torch f32 reference tightly). Pass
    # compute_dtype=jnp.bfloat16 on any generation for ~2x MXU throughput
    # (with looser tolerances, since h is truncated to bf16 before matmul2).
    out = feed_forward(x, w1, b1, w2, b2)
    jax.block_until_ready(out)

    # Pure-JAX reference of the same math.
    ref = jnp.maximum(x @ w1 + b1, 0.0) @ w2 + b2
    assert out.shape == x.shape
    assert jnp.allclose(out, ref, atol=1e-5, rtol=1e-5)

    print("KERNEL_OK")
</pallas_src>

<mosaic_0001>
module attributes {stable_mosaic.version = 11 : i64} {
  func.func @_ffn_kernel(%arg0: i32, %arg1: i32, %arg2: memref<128x128xf32, #tpu.memory_space<vmem>>, %arg3: memref<128x128xf32, #tpu.memory_space<vmem>>, %arg4: memref<1x128xf32, #tpu.memory_space<vmem>>, %arg5: memref<128x128xf32, #tpu.memory_space<vmem>>, %arg6: memref<1x128xf32, #tpu.memory_space<vmem>>, %arg7: memref<128x128xf32, #tpu.memory_space<vmem>>) attributes {dimension_semantics = [#tpu.dimension_semantics<parallel>, #tpu.dimension_semantics<arbitrary>], iteration_bounds = array<i64: 1, 1>, scalar_prefetch = 0 : i64, scratch_operands = 0 : i64, tpu.core_type = #tpu.core_type<tc>, window_params = [{transform_indices = @transform_0, window_bounds = array<i64: 128, 128>}, {transform_indices = @transform_1, window_bounds = array<i64: 128, 128>}, {transform_indices = @transform_2, window_bounds = array<i64: 1, 128>}, {transform_indices = @transform_3, window_bounds = array<i64: 128, 128>}, {pipeline_mode = #tpu.pipeline_mode<synchronous>, transform_indices = @transform_4, window_bounds = array<i64: 1, 128>}, {transform_indices = @transform_5, window_bounds = array<i64: 128, 128>}]} {
    %c0 = arith.constant 0 : index
    %c0_0 = arith.constant 0 : index
    %0 = vector.load %arg2[%c0, %c0_0] : memref<128x128xf32, #tpu.memory_space<vmem>>, vector<128x128xf32>
    %c0_1 = arith.constant 0 : index
    %c0_2 = arith.constant 0 : index
    %1 = vector.load %arg3[%c0_1, %c0_2] : memref<128x128xf32, #tpu.memory_space<vmem>>, vector<128x128xf32>
    %cst = arith.constant dense<0.000000e+00> : vector<128x128xf32>
    %2 = tpu.matmul %0, %1, %cst {dimension_numbers = #tpu.dot_dimension_numbers<[1], [0], [0], [1], [0, 0, 1, 1], [], []>} : vector<128x128xf32>, vector<128x128xf32>, vector<128x128xf32> -> vector<128x128xf32>
    %c0_3 = arith.constant 0 : index
    %c0_4 = arith.constant 0 : index
    %3 = vector.load %arg4[%c0_3, %c0_4] : memref<1x128xf32, #tpu.memory_space<vmem>>, vector<1x128xf32>
    %4 = vector.broadcast %3 : vector<1x128xf32> to vector<128x128xf32>
    %5 = arith.addf %2, %4 : vector<128x128xf32>
    %cst_5 = arith.constant 0.000000e+00 : f32
    %6 = vector.broadcast %cst_5 : f32 to vector<128x128xf32>
    %7 = arith.maximumf %5, %6 : vector<128x128xf32>
    %c0_6 = arith.constant 0 : index
    %c0_7 = arith.constant 0 : index
    %8 = vector.load %arg5[%c0_6, %c0_7] : memref<128x128xf32, #tpu.memory_space<vmem>>, vector<128x128xf32>
    %cst_8 = arith.constant dense<0.000000e+00> : vector<128x128xf32>
    %9 = tpu.matmul %7, %8, %cst_8 {dimension_numbers = #tpu.dot_dimension_numbers<[1], [0], [0], [1], [0, 0, 1, 1], [], []>} : vector<128x128xf32>, vector<128x128xf32>, vector<128x128xf32> -> vector<128x128xf32>
    %c0_i32 = arith.constant 0 : i32
    %10 = arith.cmpi eq, %arg1, %c0_i32 : i32
    %11 = arith.extui %10 : i1 to i32
    %c0_i32_9 = arith.constant 0 : i32
    %12 = arith.cmpi ne, %11, %c0_i32_9 : i32
    scf.if %12 {
      %c0_12 = arith.constant 0 : index
      %c0_13 = arith.constant 0 : index
      %16 = vector.load %arg6[%c0_12, %c0_13] : memref<1x128xf32, #tpu.memory_space<vmem>>, vector<1x128xf32>
      %17 = vector.broadcast %16 : vector<1x128xf32> to vector<128x128xf32>
      %18 = arith.addf %9, %17 : vector<128x128xf32>
      %c0_14 = arith.constant 0 : index
      %c0_15 = arith.constant 0 : index
      %19 = vector.load %arg7[%c0_14, %c0_15] : memref<128x128xf32, #tpu.memory_space<vmem>>, vector<128x128xf32>
      tpu.vector_store %arg7[%c0_14, %c0_15], %18 {strides = array<i32>} : memref<128x128xf32, #tpu.memory_space<vmem>>, vector<128x128xf32>,
    } else {
    }
    %c0_i32_10 = arith.constant 0 : i32
    %13 = arith.cmpi sgt, %arg1, %c0_i32_10 : i32
    %14 = arith.extui %13 : i1 to i32
    %c0_i32_11 = arith.constant 0 : i32
    %15 = arith.cmpi ne, %14, %c0_i32_11 : i32
    scf.if %15 {
      %c0_12 = arith.constant 0 : index
      %c0_13 = arith.constant 0 : index
      %16 = vector.load %arg7[%c0_12, %c0_13] : memref<128x128xf32, #tpu.memory_space<vmem>>, vector<128x128xf32>
      %17 = arith.addf %16, %9 : vector<128x128xf32>
      %c0_14 = arith.constant 0 : index
      %c0_15 = arith.constant 0 : index
      %18 = vector.load %arg7[%c0_14, %c0_15] : memref<128x128xf32, #tpu.memory_space<vmem>>, vector<128x128xf32>
      tpu.vector_store %arg7[%c0_14, %c0_15], %17 {strides = array<i32>} : memref<128x128xf32, #tpu.memory_space<vmem>>, vector<128x128xf32>,
    } else {
    }
    return
  }
  func.func @transform_0(%arg0: i32, %arg1: i32) -> (i32, i32) {
    %c0_i32 = arith.constant 0 : i32
    %c0_i32_0 = arith.constant 0 : i32
    return %arg0, %c0_i32 : i32, i32
  }
  func.func @transform_1(%arg0: i32, %arg1: i32) -> (i32, i32) {
    %c0_i32 = arith.constant 0 : i32
    %c0_i32_0 = arith.constant 0 : i32
    return %c0_i32, %arg1 : i32, i32
  }
  func.func @transform_2(%arg0: i32, %arg1: i32) -> (i32, i32) {
    %c0_i32 = arith.constant 0 : i32
    %c0_i32_0 = arith.constant 0 : i32
    return %c0_i32, %arg1 : i32, i32
  }
  func.func @transform_3(%arg0: i32, %arg1: i32) -> (i32, i32) {
    %c0_i32 = arith.constant 0 : i32
    %c0_i32_0 = arith.constant 0 : i32
    return %arg1, %c0_i32 : i32, i32
  }
  func.func @transform_4(%arg0: i32, %arg1: i32) -> (i32, i32) {
    %c0_i32 = arith.constant 0 : i32
    %c0_i32_0 = arith.constant 0 : i32
    %c0_i32_1 = arith.constant 0 : i32
    return %c0_i32, %c0_i32_0 : i32, i32
  }
  func.func @transform_5(%arg0: i32, %arg1: i32) -> (i32, i32) {
    %c0_i32 = arith.constant 0 : i32
    %c0_i32_0 = arith.constant 0 : i32
    return %arg0, %c0_i32 : i32, i32
  }
}

</mosaic_0001>

<llo_original>
// kernel: tpu_custom_call.1
$region0: #{tpu_custom_call.1}
  #allocation0 [shape = 'u32[]', space=smem, size = 0x4, offset = 0x4, fixed_abs, tag = 'smem constant byte address 0x4 - core index']
  #allocation1 [shape = 'u32[144,128]{1,0:T(1,128)}', space=vmem, size = 0x12000, scoped, tag = 'internal scratch']
  %s0 = inlined_call_operand.hbm [shape: f32[128,128], index: 0, kind: input, shape index: {}]
  %s1 = inlined_call_operand.hbm [shape: f32[128,128], index: 1, kind: input, shape index: {}]
  %s2 = inlined_call_operand.vmem [shape: f32[1,128], index: 2, kind: input, shape index: {}]
  %s3 = inlined_call_operand.hbm [shape: f32[128,128], index: 3, kind: input, shape index: {}]
  %s4 = inlined_call_operand.vmem [shape: f32[1,128], index: 4, kind: input, shape index: {}]
  %s5 = inlined_call_operand.hbm [shape: f32[128,128], index: 5, kind: output, shape index: {}]
  %s6 = sld [smem:[#allocation0]]
  $region50: #{tpu_custom_call.1} parent=0
    _
  %s8 = ssub.s32 1, %s6
  %s9 = scalar_select 0, %s8, %s6
  $region1: #{tpu_custom_call.1} parent=0
    #allocation2 [shape = 'u8[65536]{0}', space=vmem, size = 0x10000, scoped, tag = 'input window, operand 0, single buffered']
    #allocation3 [shape = 's32[1]{0}', space=sflag, size = 0x4, scoped, tag = 'scoped memory for tpu_custom_call.1']
    #allocation4 [shape = 's32[1]{0}', space=sflag, size = 0x4, scoped, tag = 'scoped memory for tpu_custom_call.1']
    #allocation5 [shape = 'u8[65536]{0}', space=vmem, size = 0x10000, scoped, tag = 'input window, operand 1, single buffered']
    #allocation6 [shape = 's32[1]{0}', space=sflag, size = 0x4, scoped, tag = 'scoped memory for tpu_custom_call.1']
    #allocation7 [shape = 'u8[65536]{0}', space=vmem, size = 0x10000, scoped, tag = 'input window, operand 3, single buffered']
    #allocation8 [shape = 'u8[65536]{0}', space=vmem, size = 0x10000, scoped, tag = 'output window, operand 0, single buffered']
    %10 = vsyncpa [#allocation3], 0
    %11 = vsyncpa [#allocation6], 0
    %12 = vsyncpa [#allocation4], 0
    // Predicated region
    $region2: #{tpu_custom_call.1} parent=1 // pred_check
      _
    $region3: #{tpu_custom_call.1} parent=1 // pred_check_branch
      %14 = sbr.rel (0) target = $region5
    $region4: #{tpu_custom_call.1} parent=1 // pred_region
      %s16 = ssub.s32 2048, 2048
      %17 = vsyncadd [#allocation3], %s16
      %s18 = sshll.u32 [#allocation2], 4
      %s19 = int_to_ptr.vmem [resolvable:$true] %s18
      %24 = dma.hbm_to_vmem [thread:$0]  %s0, 2048, %s19, [#allocation3], 128, 128, 8
    $region5: #{tpu_custom_call.1} parent=1 // pred_fallthru
      _
    // Predicated region
    $region6: #{tpu_custom_call.1} parent=1 // pred_check
      _
    $region7: #{tpu_custom_call.1} parent=1 // pred_check_branch
      %26 = sbr.rel (0) target = $region9
    $region8: #{tpu_custom_call.1} parent=1 // pred_region
      %s28 = ssub.s32 2048, 2048
      %29 = vsyncadd [#allocation6], %s28
      %s30 = sshll.u32 [#allocation5], 4
      %s31 = int_to_ptr.vmem [resolvable:$true] %s30
      %36 = dma.hbm_to_vmem [thread:$0]  %s1, 2048, %s31, [#allocation6], 128, 128, 8
    $region9: #{tpu_custom_call.1} parent=1 // pred_fallthru
      _
    // Predicated region
    $region10: #{tpu_custom_call.1} parent=1 // pred_check
      _
    $region11: #{tpu_custom_call.1} parent=1 // pred_check_branch
      %38 = sbr.rel (0) target = $region13
    $region12: #{tpu_custom_call.1} parent=1 // pred_region
      _
    $region13: #{tpu_custom_call.1} parent=1 // pred_fallthru
      _
    // Predicated region
    $region14: #{tpu_custom_call.1} parent=1 // pred_check
      _
    $region15: #{tpu_custom_call.1} parent=1 // pred_check_branch
      %40 = sbr.rel (0) target = $region17
    $region16: #{tpu_custom_call.1} parent=1 // pred_region
      %s42 = ssub.s32 2048, 2048
      %43 = vsyncadd [#allocation6], %s42
      %s44 = sshll.u32 [#allocation7], 4
      %s45 = int_to_ptr.vmem [resolvable:$true] %s44
      %50 = dma.hbm_to_vmem [thread:$0]  %s3, 2048, %s45, [#allocation6], 128, 128, 8
    $region17: #{tpu_custom_call.1} parent=1 // pred_fallthru
      _
    // Predicated region
    $region18: #{tpu_custom_call.1} parent=1 // pred_check
      _
    $region19: #{tpu_custom_call.1} parent=1 // pred_check_branch
      %52 = sbr.rel (0) target = $region21
    $region20: #{tpu_custom_call.1} parent=1 // pred_region
      _
    $region21: #{tpu_custom_call.1} parent=1 // pred_fallthru
      _
    // Predicated region
    $region22: #{tpu_custom_call.1} parent=1 // pred_check
      _
    $region23: #{tpu_custom_call.1} parent=1 // pred_check_branch
      %54 = sbr.rel (0) target = $region25
    $region24: #{tpu_custom_call.1} parent=1 // pred_region
      %55 = dma.done [#allocation3], 2048
    $region25: #{tpu_custom_call.1} parent=1 // pred_fallthru
      _
    // Predicated region
    $region26: #{tpu_custom_call.1} parent=1 // pred_check
      _
    $region27: #{tpu_custom_call.1} parent=1 // pred_check_branch
      %57 = sbr.rel (0) target = $region29
    $region28: #{tpu_custom_call.1} parent=1 // pred_region
      %58 = dma.done [#allocation6], 2048
    $region29: #{tpu_custom_call.1} parent=1 // pred_fallthru
      _
    // Predicated region
    $region30: #{tpu_custom_call.1} parent=1 // pred_check
      _
    $region31: #{tpu_custom_call.1} parent=1 // pred_check_branch
      %60 = sbr.rel (0) target = $region33
    $region32: #{tpu_custom_call.1} parent=1 // pred_region
      %61 = dma.done [#allocation6], 2048
    $region33: #{tpu_custom_call.1} parent=1 // pred_fallthru
      _
    %v62 = vld [vmem:[#allocation2] sm:$0xff]
    %v63 = vld [vmem:[#allocation2 + $0x8] sm:$0xff]
    %v64 = vld [vmem:[#allocation2 + $0x10] sm:$0xff]
    %v65 = vld [vmem:[#allocation2 + $0x18] sm:$0xff]
    %v66 = vld [vmem:[#allocation2 + $0x20] sm:$0xff]
    %v67 = vld [vmem:[#allocation2 + $0x28] sm:$0xff]
    %v68 = vld [vmem:[#allocation2 + $0x30] sm:$0xff]
    %v69 = vld [vmem:[#allocation2 + $0x38] sm:$0xff]
    %v70 = vld [vmem:[#allocation2 + $0x40] sm:$0xff]
    %v71 = vld [vmem:[#allocation2 + $0x48] sm:$0xff]
    %v72 = vld [vmem:[#allocation2 + $0x50] sm:$0xff]
    %v73 = vld [vmem:[#allocation2 + $0x58] sm:$0xff]
    %v74 = vld [vmem:[#allocation2 + $0x60] sm:$0xff]
    %v75 = vld [vmem:[#allocation2 + $0x68] sm:$0xff]
    %v76 = vld [vmem:[#allocation2 + $0x70] sm:$0xff]
    %v77 = vld [vmem:[#allocation2 + $0x78] sm:$0xff]
    %v78 = vld [vmem:[#allocation5] sm:$0xff]
    %v79 = vld [vmem:[#allocation5 + $0x8] sm:$0xff]
    %v80 = vld [vmem:[#allocation5 + $0x10] sm:$0xff]
    %v81 = vld [vmem:[#allocation5 + $0x18] sm:$0xff]
    %v82 = vld [vmem:[#allocation5 + $0x20] sm:$0xff]
    %v83 = vld [vmem:[#allocation5 + $0x28] sm:$0xff]
    %v84 = vld [vmem:[#allocation5 + $0x30] sm:$0xff]
    %v85 = vld [vmem:[#allocation5 + $0x38] sm:$0xff]
    %v86 = vld [vmem:[#allocation5 + $0x40] sm:$0xff]
    %v87 = vld [vmem:[#allocation5 + $0x48] sm:$0xff]
    %v88 = vld [vmem:[#allocation5 + $0x50] sm:$0xff]
    %v89 = vld [vmem:[#allocation5 + $0x58] sm:$0xff]
    %v90 = vld [vmem:[#allocation5 + $0x60] sm:$0xff]
    %v91 = vld [vmem:[#allocation5 + $0x68] sm:$0xff]
    %v92 = vld [vmem:[#allocation5 + $0x70] sm:$0xff]
    %v93 = vld [vmem:[#allocation5 + $0x78] sm:$0xff]
    %v94 = vld [vmem:[%s2] sm:$0x1]
    %v96 = vlaneseq
    %v97 = vshrl.u32 %v96, 7
    %v98 = vsub.s32 0, %v97
    %v99 = vrot.slane %v94, %v98
    %101 = vmatprep.subr.mxu0 0.0
    %102 = vmatpush1.msra.mxu0 %v93
    %103 = vmatprep.subr.mxu0 0.0
    %104 = vmatpush1.msra.mxu0 %v92
    %105 = vmatprep.subr.mxu0 0.0
    %106 = vmatpush1.msra.mxu0 %v91
    %107 = vmatprep.subr.mxu0 0.0
    %108 = vmatpush1.msra.mxu0 %v90
    %109 = vmatprep.subr.mxu0 0.0
    %110 = vmatpush1.msra.mxu0 %v89
    %111 = vmatprep.subr.mxu0 0.0
    %112 = vmatpush1.msra.mxu0 %v88
    %113 = vmatprep.subr.mxu0 0.0
    %114 = vmatpush1.msra.mxu0 %v87
    %115 = vmatprep.subr.mxu0 0.0
    %116 = vmatpush1.msra.mxu0 %v86
    %117 = vmatprep.subr.mxu0 0.0
    %118 = vmatpush1.msra.mxu0 %v85
    %119 = vmatprep.subr.mxu0 0.0
    %120 = vmatpush1.msra.mxu0 %v84
    %121 = vmatprep.subr.mxu0 0.0
    %122 = vmatpush1.msra.mxu0 %v83
    %123 = vmatprep.subr.mxu0 0.0
    %124 = vmatpush1.msra.mxu0 %v82
    %125 = vmatprep.subr.mxu0 0.0
    %126 = vmatpush1.msra.mxu0 %v81
    %127 = vmatprep.subr.mxu0 0.0
    %128 = vmatpush1.msra.mxu0 %v80
    %129 = vmatprep.subr.mxu0 0.0
    %130 = vmatpush1.msra.mxu0 %v79
    %131 = vmatprep.subr.mxu0 0.0
    %132 = vmatpush1.msra.mxu0 %v78
    %133 = vmatprep.subr.mxu0 0.0
    %134 = vmatpush2.msra.mxu0 0.0
    %135 = vmatprep.subr.mxu0 0.0
    %136 = vmatpush2.msra.mxu0 0.0
    %137 = vmatprep.subr.mxu0 0.0
    %138 = vmatpush2.msra.mxu0 0.0
    %139 = vmatprep.subr.mxu0 0.0
    %140 = vmatpush2.msra.mxu0 0.0
    %141 = vmatprep.subr.mxu0 0.0
    %142 = vmatpush2.msra.mxu0 0.0
    %143 = vmatprep.subr.mxu0 0.0
    %144 = vmatpush2.msra.mxu0 0.0
    %145 = vmatprep.subr.mxu0 0.0
    %146 = vmatpush2.msra.mxu0 0.0
    %147 = vmatprep.subr.mxu0 0.0
    %148 = vmatpush2.msra.mxu0 0.0
    %149 = vmatprep.subr.mxu0 0.0
    %150 = vmatpush2.msra.mxu0 0.0
    %151 = vmatprep.subr.mxu0 0.0
    %152 = vmatpush2.msra.mxu0 0.0
    %153 = vmatprep.subr.mxu0 0.0
    %154 = vmatpush2.msra.mxu0 0.0
    %155 = vmatprep.subr.mxu0 0.0
    %156 = vmatpush2.msra.mxu0 0.0
    %157 = vmatprep.subr.mxu0 0.0
    %158 = vmatpush2.msra.mxu0 0.0
    %159 = vmatprep.subr.mxu0 0.0
    %160 = vmatpush2.msra.mxu0 0.0
    %161 = vmatprep.subr.mxu0 0.0
    %162 = vmatpush2.msra.mxu0 0.0
    %163 = vmatprep.subr.mxu0 0.0
    %164 = vmatpush2.msra.mxu0 0.0
    %165 = vmatprep.mubr.f32.mxu0 0.0
    %166 = vmatmul.mubr.f32.gmra.mxu0 %v62
    %v167 = vpop.f32.mrf.mxu0
    %v168 = vadd.f32 %v99, %v167
    %v169 = vpop.f32.mrf.mxu0
    %170 = vmatprep.mubr.f32.mxu0 0.0
    %171 = vmatmul.mubr.f32.gmra.mxu0 %v63
    %v172 = vpop.f32.mrf.mxu0
    %v173 = vadd.f32 %v99, %v172
    %v174 = vpop.f32.mrf.mxu0
    %175 = vmatprep.mubr.f32.mxu0 0.0
    %176 = vmatmul.mubr.f32.gmra.mxu0 %v64
    %v177 = vpop.f32.mrf.mxu0
    %v178 = vadd.f32 %v99, %v177
    %v179 = vpop.f32.mrf.mxu0
    %180 = vmatprep.mubr.f32.mxu0 0.0
    %181 = vmatmul.mubr.f32.gmra.mxu0 %v65
    %v182 = vpop.f32.mrf.mxu0
    %v183 = vadd.f32 %v99, %v182
    %v184 = vpop.f32.mrf.mxu0
    %185 = vmatprep.mubr.f32.mxu0 0.0
    %186 = vmatmul.mubr.f32.gmra.mxu0 %v66
    %v187 = vpop.f32.mrf.mxu0
    %v188 = vadd.f32 %v99, %v187
    %v189 = vpop.f32.mrf.mxu0
    %190 = vmatprep.mubr.f32.mxu0 0.0
    %191 = vmatmul.mubr.f32.gmra.mxu0 %v67
    %v192 = vpop.f32.mrf.mxu0
    %v193 = vadd.f32 %v99, %v192
    %v194 = vpop.f32.mrf.mxu0
    %195 = vmatprep.mubr.f32.mxu0 0.0
    %196 = vmatmul.mubr.f32.gmra.mxu0 %v68
    %v197 = vpop.f32.mrf.mxu0
    %v198 = vadd.f32 %v99, %v197
    %v199 = vpop.f32.mrf.mxu0
    %200 = vmatprep.mubr.f32.mxu0 0.0
    %201 = vmatmul.mubr.f32.gmra.mxu0 %v69
    %v202 = vpop.f32.mrf.mxu0
    %v203 = vadd.f32 %v99, %v202
    %v204 = vpop.f32.mrf.mxu0
    %205 = vmatprep.mubr.f32.mxu0 0.0
    %206 = vmatmul.mubr.f32.gmra.mxu0 %v70
    %v207 = vpop.f32.mrf.mxu0
    %v208 = vadd.f32 %v99, %v207
    %v209 = vpop.f32.mrf.mxu0
    %210 = vmatprep.mubr.f32.mxu0 0.0
    %211 = vmatmul.mubr.f32.gmra.mxu0 %v71
    %v212 = vpop.f32.mrf.mxu0
    %v213 = vadd.f32 %v99, %v212
    %v214 = vpop.f32.mrf.mxu0
    %215 = vmatprep.mubr.f32.mxu0 0.0
    %216 = vmatmul.mubr.f32.gmra.mxu0 %v72
    %v217 = vpop.f32.mrf.mxu0
    %v218 = vadd.f32 %v99, %v217
    %v219 = vpop.f32.mrf.mxu0
    %220 = vmatprep.mubr.f32.mxu0 0.0
    %221 = vmatmul.mubr.f32.gmra.mxu0 %v73
    %v222 = vpop.f32.mrf.mxu0
    %v223 = vadd.f32 %v99, %v222
    %v224 = vpop.f32.mrf.mxu0
    %225 = vmatprep.mubr.f32.mxu0 0.0
    %226 = vmatmul.mubr.f32.gmra.mxu0 %v74
    %v227 = vpop.f32.mrf.mxu0
    %v228 = vadd.f32 %v99, %v227
    %v229 = vpop.f32.mrf.mxu0
    %230 = vmatprep.mubr.f32.mxu0 0.0
    %231 = vmatmul.mubr.f32.gmra.mxu0 %v75
    %v232 = vpop.f32.mrf.mxu0
    %v233 = vadd.f32 %v99, %v232
    %v234 = vpop.f32.mrf.mxu0
    %235 = vmatprep.mubr.f32.mxu0 0.0
    %236 = vmatmul.mubr.f32.gmra.mxu0 %v76
    %v237 = vpop.f32.mrf.mxu0
    %v238 = vadd.f32 %v99, %v237
    %v239 = vpop.f32.mrf.mxu0
    %240 = vmatprep.mubr.f32.mxu0 0.0
    %241 = vmatmul.mubr.f32.gmra.mxu0 %v77
    %v242 = vpop.f32.mrf.mxu0
    %v243 = vadd.f32 %v99, %v242
    %v244 = vpop.f32.mrf.mxu0
    %245 = vdwg.mxu0
    %v246 = vmax.f32 %v168, 0.0
    %v247 = vmax.f32 %v173, 0.0
    %v248 = vmax.f32 %v178, 0.0
    %v249 = vmax.f32 %v183, 0.0
    %v250 = vmax.f32 %v188, 0.0
    %v251 = vmax.f32 %v193, 0.0
    %v252 = vmax.f32 %v198, 0.0
    %v253 = vmax.f32 %v203, 0.0
    %v254 = vmax.f32 %v208, 0.0
    %v255 = vmax.f32 %v213, 0.0
    %v256 = vmax.f32 %v218, 0.0
    %v257 = vmax.f32 %v223, 0.0
    %v258 = vmax.f32 %v228, 0.0
    %v259 = vmax.f32 %v233, 0.0
    %v260 = vmax.f32 %v238, 0.0
    %v261 = vmax.f32 %v243, 0.0
    %v262 = vld [vmem:[#allocation7] sm:$0xff]
    %v263 = vld [vmem:[#allocation7 + $0x8] sm:$0xff]
    %v264 = vld [vmem:[#allocation7 + $0x10] sm:$0xff]
    %v265 = vld [vmem:[#allocation7 + $0x18] sm:$0xff]
    %v266 = vld [vmem:[#allocation7 + $0x20] sm:$0xff]
    %v267 = vld [vmem:[#allocation7 + $0x28] sm:$0xff]
    %v268 = vld [vmem:[#allocation7 + $0x30] sm:$0xff]
    %v269 = vld [vmem:[#allocation7 + $0x38] sm:$0xff]
    %v270 = vld [vmem:[#allocation7 + $0x40] sm:$0xff]
    %v271 = vld [vmem:[#allocation7 + $0x48] sm:$0xff]
    %v272 = vld [vmem:[#allocation7 + $0x50] sm:$0xff]
    %v273 = vld [vmem:[#allocation7 + $0x58] sm:$0xff]
    %v274 = vld [vmem:[#allocation7 + $0x60] sm:$0xff]
    %v275 = vld [vmem:[#allocation7 + $0x68] sm:$0xff]
    %v276 = vld [vmem:[#allocation7 + $0x70] sm:$0xff]
    %v277 = vld [vmem:[#allocation7 + $0x78] sm:$0xff]
    %278 = vmatprep.subr.mxu0 0.0
    %279 = vmatpush1.msra.mxu0 %v277
    %280 = vmatprep.subr.mxu0 0.0
    %281 = vmatpush1.msra.mxu0 %v276
    %282 = vmatprep.subr.mxu0 0.0
    %283 = vmatpush1.msra.mxu0 %v275
    %284 = vmatprep.subr.mxu0 0.0
    %285 = vmatpush1.msra.mxu0 %v274
    %286 = vmatprep.subr.mxu0 0.0
    %287 = vmatpush1.msra.mxu0 %v273
    %288 = vmatprep.subr.mxu0 0.0
    %289 = vmatpush1.msra.mxu0 %v272
    %290 = vmatprep.subr.mxu0 0.0
    %291 = vmatpush1.msra.mxu0 %v271
    %292 = vmatprep.subr.mxu0 0.0
    %293 = vmatpush1.msra.mxu0 %v270
    %294 = vmatprep.subr.mxu0 0.0
    %295 = vmatpush1.msra.mxu0 %v269
    %296 = vmatprep.subr.mxu0 0.0
    %297 = vmatpush1.msra.mxu0 %v268
    %298 = vmatprep.subr.mxu0 0.0
    %299 = vmatpush1.msra.mxu0 %v267
    %300 = vmatprep.subr.mxu0 0.0
    %301 = vmatpush1.msra.mxu0 %v266
    %302 = vmatprep.subr.mxu0 0.0
    %303 = vmatpush1.msra.mxu0 %v265
    %304 = vmatprep.subr.mxu0 0.0
    %305 = vmatpush1.msra.mxu0 %v264
    %306 = vmatprep.subr.mxu0 0.0
    %307 = vmatpush1.msra.mxu0 %v263
    %308 = vmatprep.subr.mxu0 0.0
    %309 = vmatpush1.msra.mxu0 %v262
    %310 = vmatprep.subr.mxu0 0.0
    %311 = vmatpush2.msra.mxu0 0.0
    %312 = vmatprep.subr.mxu0 0.0
    %313 = vmatpush2.msra.mxu0 0.0
    %314 = vmatprep.subr.mxu0 0.0
    %315 = vmatpush2.msra.mxu0 0.0
    %316 = vmatprep.subr.mxu0 0.0
    %317 = vmatpush2.msra.mxu0 0.0
    %318 = vmatprep.subr.mxu0 0.0
    %319 = vmatpush2.msra.mxu0 0.0
    %320 = vmatprep.subr.mxu0 0.0
    %321 = vmatpush2.msra.mxu0 0.0
    %322 = vmatprep.subr.mxu0 0.0
    %323 = vmatpush2.msra.mxu0 0.0
    %324 = vmatprep.subr.mxu0 0.0
    %325 = vmatpush2.msra.mxu0 0.0
    %326 = vmatprep.subr.mxu0 0.0
    %327 = vmatpush2.msra.mxu0 0.0
    %328 = vmatprep.subr.mxu0 0.0
    %329 = vmatpush2.msra.mxu0 0.0
    %330 = vmatprep.subr.mxu0 0.0
    %331 = vmatpush2.msra.mxu0 0.0
    %332 = vmatprep.subr.mxu0 0.0
    %333 = vmatpush2.msra.mxu0 0.0
    %334 = vmatprep.subr.mxu0 0.0
    %335 = vmatpush2.msra.mxu0 0.0
    %336 = vmatprep.subr.mxu0 0.0
    %337 = vmatpush2.msra.mxu0 0.0
    %338 = vmatprep.subr.mxu0 0.0
    %339 = vmatpush2.msra.mxu0 0.0
    %340 = vmatprep.subr.mxu0 0.0
    %341 = vmatpush2.msra.mxu0 0.0
    %342 = vmatprep.mubr.f32.mxu0 0.0
    %343 = vmatmul.mubr.f32.gmra.mxu0 %v246
    %v344 = vpop.f32.mrf.mxu0
    %v345 = vadd.f32 0.0, %v344
    %v346 = vpop.f32.mrf.mxu0
    %347 = vmatprep.mubr.f32.mxu0 0.0
    %348 = vmatmul.mubr.f32.gmra.mxu0 %v247
    %v349 = vpop.f32.mrf.mxu0
    %v350 = vadd.f32 0.0, %v349
    %v351 = vpop.f32.mrf.mxu0
    %352 = vmatprep.mubr.f32.mxu0 0.0
    %353 = vmatmul.mubr.f32.gmra.mxu0 %v248
    %v354 = vpop.f32.mrf.mxu0
    %v355 = vadd.f32 0.0, %v354
    %v356 = vpop.f32.mrf.mxu0
    %357 = vmatprep.mubr.f32.mxu0 0.0
    %358 = vmatmul.mubr.f32.gmra.mxu0 %v249
    %v359 = vpop.f32.mrf.mxu0
    %v360 = vadd.f32 0.0, %v359
    %v361 = vpop.f32.mrf.mxu0
    %362 = vmatprep.mubr.f32.mxu0 0.0
    %363 = vmatmul.mubr.f32.gmra.mxu0 %v250
    %v364 = vpop.f32.mrf.mxu0
    %v365 = vadd.f32 0.0, %v364
    %v366 = vpop.f32.mrf.mxu0
    %367 = vmatprep.mubr.f32.mxu0 0.0
    %368 = vmatmul.mubr.f32.gmra.mxu0 %v251
    %v369 = vpop.f32.mrf.mxu0
    %v370 = vadd.f32 0.0, %v369
    %v371 = vpop.f32.mrf.mxu0
    %372 = vmatprep.mubr.f32.mxu0 0.0
    %373 = vmatmul.mubr.f32.gmra.mxu0 %v252
    %v374 = vpop.f32.mrf.mxu0
    %v375 = vadd.f32 0.0, %v374
    %v376 = vpop.f32.mrf.mxu0
    %377 = vmatprep.mubr.f32.mxu0 0.0
    %378 = vmatmul.mubr.f32.gmra.mxu0 %v253
    %v379 = vpop.f32.mrf.mxu0
    %v380 = vadd.f32 0.0, %v379
    %v381 = vpop.f32.mrf.mxu0
    %382 = vmatprep.mubr.f32.mxu0 0.0
    %383 = vmatmul.mubr.f32.gmra.mxu0 %v254
    %v384 = vpop.f32.mrf.mxu0
    %v385 = vadd.f32 0.0, %v384
    %v386 = vpop.f32.mrf.mxu0
    %387 = vmatprep.mubr.f32.mxu0 0.0
    %388 = vmatmul.mubr.f32.gmra.mxu0 %v255
    %v389 = vpop.f32.mrf.mxu0
    %v390 = vadd.f32 0.0, %v389
    %v391 = vpop.f32.mrf.mxu0
    %392 = vmatprep.mubr.f32.mxu0 0.0
    %393 = vmatmul.mubr.f32.gmra.mxu0 %v256
    %v394 = vpop.f32.mrf.mxu0
    %v395 = vadd.f32 0.0, %v394
    %v396 = vpop.f32.mrf.mxu0
    %397 = vmatprep.mubr.f32.mxu0 0.0
    %398 = vmatmul.mubr.f32.gmra.mxu0 %v257
    %v399 = vpop.f32.mrf.mxu0
    %v400 = vadd.f32 0.0, %v399
    %v401 = vpop.f32.mrf.mxu0
    %402 = vmatprep.mubr.f32.mxu0 0.0
    %403 = vmatmul.mubr.f32.gmra.mxu0 %v258
    %v404 = vpop.f32.mrf.mxu0
    %v405 = vadd.f32 0.0, %v404
    %v406 = vpop.f32.mrf.mxu0
    %407 = vmatprep.mubr.f32.mxu0 0.0
    %408 = vmatmul.mubr.f32.gmra.mxu0 %v259
    %v409 = vpop.f32.mrf.mxu0
    %v410 = vadd.f32 0.0, %v409
    %v411 = vpop.f32.mrf.mxu0
    %412 = vmatprep.mubr.f32.mxu0 0.0
    %413 = vmatmul.mubr.f32.gmra.mxu0 %v260
    %v414 = vpop.f32.mrf.mxu0
    %v415 = vadd.f32 0.0, %v414
    %v416 = vpop.f32.mrf.mxu0
    %417 = vmatprep.mubr.f32.mxu0 0.0
    %418 = vmatmul.mubr.f32.gmra.mxu0 %v261
    %v419 = vpop.f32.mrf.mxu0
    %v420 = vadd.f32 0.0, %v419
    %v421 = vpop.f32.mrf.mxu0
    %422 = vdwg.mxu0
    %p423 = scmp.eq.s32.totalorder 0, 0
    // Predicated region
    $region34: #{tpu_custom_call.1} parent=1 // pred_check
      %p424 = pneg %p423
    $region35: #{tpu_custom_call.1} parent=1 // pred_check_branch
      %426 = sbr.rel (%p424) target = $region37
    $region36: #{tpu_custom_call.1} parent=1 // pred_region
      %v427 = vld [vmem:[%s4] sm:$0x1]
      %v429 = vlaneseq
      %v430 = vshrl.u32 %v429, 7
      %v431 = vsub.s32 0, %v430
      %v432 = vrot.slane %v427, %v431
      %v434 = vadd.f32 %v345, %v432
      %v435 = vadd.f32 %v350, %v432
      %v436 = vadd.f32 %v355, %v432
      %v437 = vadd.f32 %v360, %v432
      %v438 = vadd.f32 %v365, %v432
      %v439 = vadd.f32 %v370, %v432
      %v440 = vadd.f32 %v375, %v432
      %v441 = vadd.f32 %v380, %v432
      %v442 = vadd.f32 %v385, %v432
      %v443 = vadd.f32 %v390, %v432
      %v444 = vadd.f32 %v395, %v432
      %v445 = vadd.f32 %v400, %v432
      %v446 = vadd.f32 %v405, %v432
      %v447 = vadd.f32 %v410, %v432
      %v448 = vadd.f32 %v415, %v432
      %v449 = vadd.f32 %v420, %v432
      %450 = vst [vmem:[#allocation8] sm:$0xff] %v434
      %451 = vst [vmem:[#allocation8 + $0x8] sm:$0xff] %v435
      %452 = vst [vmem:[#allocation8 + $0x10] sm:$0xff] %v436
      %453 = vst [vmem:[#allocation8 + $0x18] sm:$0xff] %v437
      %454 = vst [vmem:[#allocation8 + $0x20] sm:$0xff] %v438
      %455 = vst [vmem:[#allocation8 + $0x28] sm:$0xff] %v439
      %456 = vst [vmem:[#allocation8 + $0x30] sm:$0xff] %v440
      %457 = vst [vmem:[#allocation8 + $0x38] sm:$0xff] %v441
      %458 = vst [vmem:[#allocation8 + $0x40] sm:$0xff] %v442
      %459 = vst [vmem:[#allocation8 + $0x48] sm:$0xff] %v443
      %460 = vst [vmem:[#allocation8 + $0x50] sm:$0xff] %v444
      %461 = vst [vmem:[#allocation8 + $0x58] sm:$0xff] %v445
      %462 = vst [vmem:[#allocation8 + $0x60] sm:$0xff] %v446
      %463 = vst [vmem:[#allocation8 + $0x68] sm:$0xff] %v447
      %464 = vst [vmem:[#allocation8 + $0x70] sm:$0xff] %v448
      %465 = vst [vmem:[#allocation8 + $0x78] sm:$0xff] %v449
    $region37: #{tpu_custom_call.1} parent=1 // pred_fallthru
      _
    %p466 = scmp.gt.s32.totalorder 0, 0
    // Predicated region
    $region38: #{tpu_custom_call.1} parent=1 // pred_check
      %p467 = pneg %p466
    $region39: #{tpu_custom_call.1} parent=1 // pred_check_branch
      %469 = sbr.rel (%p467) target = $region41
    $region40: #{tpu_custom_call.1} parent=1 // pred_region
      %v470 = vld [vmem:[#allocation8] sm:$0xff]
      %v471 = vld [vmem:[#allocation8 + $0x8] sm:$0xff]
      %v472 = vld [vmem:[#allocation8 + $0x10] sm:$0xff]
      %v473 = vld [vmem:[#allocation8 + $0x18] sm:$0xff]
      %v474 = vld [vmem:[#allocation8 + $0x20] sm:$0xff]
      %v475 = vld [vmem:[#allocation8 + $0x28] sm:$0xff]
      %v476 = vld [vmem:[#allocation8 + $0x30] sm:$0xff]
      %v477 = vld [vmem:[#allocation8 + $0x38] sm:$0xff]
      %v478 = vld [vmem:[#allocation8 + $0x40] sm:$0xff]
      %v479 = vld [vmem:[#allocation8 + $0x48] sm:$0xff]
      %v480 = vld [vmem:[#allocation8 + $0x50] sm:$0xff]
      %v481 = vld [vmem:[#allocation8 + $0x58] sm:$0xff]
      %v482 = vld [vmem:[#allocation8 + $0x60] sm:$0xff]
      %v483 = vld [vmem:[#allocation8 + $0x68] sm:$0xff]
      %v484 = vld [vmem:[#allocation8 + $0x70] sm:$0xff]
      %v485 = vld [vmem:[#allocation8 + $0x78] sm:$0xff]
      %v486 = vadd.f32 %v470, %v345
      %v487 = vadd.f32 %v471, %v350
      %v488 = vadd.f32 %v472, %v355
      %v489 = vadd.f32 %v473, %v360
      %v490 = vadd.f32 %v474, %v365
      %v491 = vadd.f32 %v475, %v370
      %v492 = vadd.f32 %v476, %v375
      %v493 = vadd.f32 %v477, %v380
      %v494 = vadd.f32 %v478, %v385
      %v495 = vadd.f32 %v479, %v390
      %v496 = vadd.f32 %v480, %v395
      %v497 = vadd.f32 %v481, %v400
      %v498 = vadd.f32 %v482, %v405
      %v499 = vadd.f32 %v483, %v410
      %v500 = vadd.f32 %v484, %v415
      %v501 = vadd.f32 %v485, %v420
      %502 = vst [vmem:[#allocation8] sm:$0xff] %v486
      %503 = vst [vmem:[#allocation8 + $0x8] sm:$0xff] %v487
      %504 = vst [vmem:[#allocation8 + $0x10] sm:$0xff] %v488
      %505 = vst [vmem:[#allocation8 + $0x18] sm:$0xff] %v489
      %506 = vst [vmem:[#allocation8 + $0x20] sm:$0xff] %v490
      %507 = vst [vmem:[#allocation8 + $0x28] sm:$0xff] %v491
      %508 = vst [vmem:[#allocation8 + $0x30] sm:$0xff] %v492
      %509 = vst [vmem:[#allocation8 + $0x38] sm:$0xff] %v493
      %510 = vst [vmem:[#allocation8 + $0x40] sm:$0xff] %v494
      %511 = vst [vmem:[#allocation8 + $0x48] sm:$0xff] %v495
      %512 = vst [vmem:[#allocation8 + $0x50] sm:$0xff] %v496
      %513 = vst [vmem:[#allocation8 + $0x58] sm:$0xff] %v497
      %514 = vst [vmem:[#allocation8 + $0x60] sm:$0xff] %v498
      %515 = vst [vmem:[#allocation8 + $0x68] sm:$0xff] %v499
      %516 = vst [vmem:[#allocation8 + $0x70] sm:$0xff] %v500
      %517 = vst [vmem:[#allocation8 + $0x78] sm:$0xff] %v501
    $region41: #{tpu_custom_call.1} parent=1 // pred_fallthru
      _
    // Predicated region
    $region42: #{tpu_custom_call.1} parent=1 // pred_check
      _
    $region43: #{tpu_custom_call.1} parent=1 // pred_check_branch
      %519 = sbr.rel (0) target = $region45
    $region44: #{tpu_custom_call.1} parent=1 // pred_region
      %s521 = ssub.s32 2048, 2048
      %522 = vsyncadd [#allocation4], %s521
      %s523 = sshll.u32 [#allocation8], 4
      %s524 = int_to_ptr.vmem [resolvable:$true] %s523
      %529 = dma.vmem_to_hbm [thread:$0]  %s524, 2048, %s5, [#allocation4], 128, 128, 8
    $region45: #{tpu_custom_call.1} parent=1 // pred_fallthru
      _
    // Predicated region
    $region46: #{tpu_custom_call.1} parent=1 // pred_check
      _
    $region47: #{tpu_custom_call.1} parent=1 // pred_check_branch
      %531 = sbr.rel (0) target = $region49
    $region48: #{tpu_custom_call.1} parent=1 // pred_region
      %532 = dma.done [#allocation4], 2048
    $region49: #{tpu_custom_call.1} parent=1 // pred_fallthru
      _
    %533 = vsyncpa [#allocation3], 1
    %534 = vsyncpa [#allocation6], 1
    %535 = vsyncpa [#allocation4], 1

</llo_original>
